<compile_context>
chip_gen: v7x
topology: tpu7x:2x2x1
jax: 0.10.0
libtpu: 0.0.40
codegen_flags: <defaults>
</compile_context>

<pallas_src>
import functools

import jax
import jax.numpy as jnp
from jax.experimental import pallas as pl
from jax.experimental.pallas import tpu as pltpu

_SUBLANE = 8


def _round_up(n, m):
    return ((n + m - 1) // m) * m


def _vmem_capacity_bytes():
    # Generation-aware cap (v7x: 64 MiB/TC, v5e/v6e: 128 MiB); conservative
    # fallback if the query is unavailable (e.g. interpret mode).
    try:
        return int(pltpu.get_tpu_info().vmem_capacity_bytes)
    except Exception:
        return 64 << 20


def _logreg_kernel(x_ref, w_ref, b_ref, o_ref):
    # MXU matmul with f32 accumulation, fused bias add (VPU).
    z = jnp.dot(x_ref[...], w_ref[...], preferred_element_type=jnp.float32)
    z = z + b_ref[...]  # (1, Out) broadcasts over the batch tile
    # Exact sigmoid via tanh identity: sigmoid(z) = 0.5 * tanh(0.5*z) + 0.5.
    # Single EUP transcendental per output vreg; no approx reciprocal.
    o_ref[...] = (0.5 * jnp.tanh(0.5 * z) + 0.5).astype(o_ref.dtype)


@functools.partial(jax.jit, static_argnames=("block_batch", "input_dtype"))
def logistic_regression_forward(x, w_t, b, *, block_batch=4096, input_dtype=None):
    """sigmoid(x @ w_t + b).

    x   : (B, In)   f32
    w_t : (In, Out) f32  (PyTorch nn.Linear weight, pre-transposed)
    b   : (Out,)    f32
    ->    (B, Out)  f32

    input_dtype=jnp.bfloat16 optionally casts the MXU inputs (x, w_t) to bf16
    (halves HBM read traffic on v6e/v7x); all post-matmul math stays f32.
    """
    B, In = x.shape
    Out = w_t.shape[1]

    if input_dtype is not None:
        x = x.astype(input_dtype)
        w_t = w_t.astype(input_dtype)
    b2d = b.reshape(1, Out).astype(jnp.float32)

    # --- Batch tile selection.
    #  * B > block_batch : large sublane-aligned tiles (amortize grid overhead,
    #    big DMAs), grid is naturally >= 2.
    #  * moderate B      : split into >= 2 tiles so v7x's second TensorCore
    #    gets work ("parallel" semantics); harmless on v5e/v6e.
    #  * tiny B          : single full-extent tile (block dim == array dim).
    if B > block_batch:
        TB = _round_up(block_batch, _SUBLANE)
    elif B >= 4 * _SUBLANE:
        TB = _round_up(pl.cdiv(B, 2), _SUBLANE)
    else:
        TB = B
    grid = (pl.cdiv(B, TB),)

    # --- VMEM budget from the actual footprint, capped per-generation.
    in_bytes = jnp.dtype(x.dtype).itemsize
    tile_bytes = (
        2 * TB * In * in_bytes      # double-buffered x tiles
        + 2 * TB * Out * 4          # double-buffered output tiles
        + In * Out * in_bytes       # resident weight
        + Out * 4                   # resident bias
    )
    cap = _vmem_capacity_bytes()
    vmem_limit = int(min(max(2 * tile_bytes, 16 << 20), cap // 2))

    cost = pl.CostEstimate(
        flops=2 * B * In * Out,
        transcendentals=B * Out,  # one tanh per output element
        bytes_accessed=(B * In + In * Out) * in_bytes + (B * Out + Out) * 4,
    )

    return pl.pallas_call(
        _logreg_kernel,
        out_shape=jax.ShapeDtypeStruct((B, Out), jnp.float32),
        grid_spec=pl.GridSpec(
            grid=grid,
            in_specs=[
                pl.BlockSpec((TB, In), lambda i: (i, 0)),    # batch-tiled x
                pl.BlockSpec((In, Out), lambda i: (0, 0)),   # weight: VMEM-resident
                pl.BlockSpec((1, Out), lambda i: (0, 0)),    # bias:   VMEM-resident
            ],
            out_specs=pl.BlockSpec((TB, Out), lambda i: (i, 0)),
        ),
        compiler_params=pltpu.CompilerParams(
            dimension_semantics=("parallel",),  # batch tiles shard across TCs (v7x)
            vmem_limit_bytes=vmem_limit,
        ),
        cost_estimate=cost,
    )(x, w_t, b2d)


if __name__ == "__main__":
    # Shapes implied by the module: Linear(input_size, output_size) on 2-D input.
    batch, input_size, output_size = 8, 32, 4

    key = jax.random.PRNGKey(0)
    kx, kw, kb = jax.random.split(key, 3)

    x = jax.random.normal(kx, (batch, input_size), dtype=jnp.float32)

    # Deterministic init mirroring torch.nn.Linear's U(-1/sqrt(in), 1/sqrt(in)).
    bound = 1.0 / (input_size ** 0.5)
    w = jax.random.uniform(kw, (output_size, input_size),
                           minval=-bound, maxval=bound, dtype=jnp.float32)
    b = jax.random.uniform(kb, (output_size,),
                           minval=-bound, maxval=bound, dtype=jnp.float32)

    # Kernel expects the weight transposed to (input_size, output_size).
    y = logistic_regression_forward(x, w.T, b)
    y = jax.block_until_ready(y)

    # Reference check against plain JAX; tanh-form sigmoid is exact, so a
    # tight tolerance holds.
    y_ref = jax.nn.sigmoid(x @ w.T + b)
    assert y.shape == (batch, output_size)
    assert jnp.allclose(y, y_ref, atol=1e-5, rtol=1e-5), float(jnp.max(jnp.abs(y - y_ref)))

    print("KERNEL_OK")
</pallas_src>

<mosaic_0001>
module attributes {stable_mosaic.version = 11 : i64} {
  func.func @_logreg_kernel(%arg0: i32, %arg1: memref<8x32xf32, #tpu.memory_space<vmem>>, %arg2: memref<32x4xf32, #tpu.memory_space<vmem>>, %arg3: memref<1x4xf32, #tpu.memory_space<vmem>>, %arg4: memref<8x4xf32, #tpu.memory_space<vmem>>) attributes {dimension_semantics = [#tpu.dimension_semantics<parallel>], iteration_bounds = array<i64: 1>, scalar_prefetch = 0 : i64, scratch_operands = 0 : i64, tpu.core_type = #tpu.core_type<tc>, window_params = [{transform_indices = @transform_0, window_bounds = array<i64: 8, 32>}, {pipeline_mode = #tpu.pipeline_mode<synchronous>, transform_indices = @transform_1, window_bounds = array<i64: 32, 4>}, {pipeline_mode = #tpu.pipeline_mode<synchronous>, transform_indices = @transform_2, window_bounds = array<i64: 1, 4>}, {transform_indices = @transform_3, window_bounds = array<i64: 8, 4>}]} {
    %c0 = arith.constant 0 : index
    %c0_0 = arith.constant 0 : index
    %0 = vector.load %arg1[%c0, %c0_0] : memref<8x32xf32, #tpu.memory_space<vmem>>, vector<8x32xf32>
    %c0_1 = arith.constant 0 : index
    %c0_2 = arith.constant 0 : index
    %1 = vector.load %arg2[%c0_1, %c0_2] : memref<32x4xf32, #tpu.memory_space<vmem>>, vector<32x4xf32>
    %cst = arith.constant dense<0.000000e+00> : vector<8x4xf32>
    %2 = tpu.matmul %0, %1, %cst {dimension_numbers = #tpu.dot_dimension_numbers<[1], [0], [0], [1], [0, 0, 1, 1], [], []>} : vector<8x32xf32>, vector<32x4xf32>, vector<8x4xf32> -> vector<8x4xf32>
    %c0_3 = arith.constant 0 : index
    %c0_4 = arith.constant 0 : index
    %3 = vector.load %arg3[%c0_3, %c0_4] : memref<1x4xf32, #tpu.memory_space<vmem>>, vector<1x4xf32>
    %4 = vector.broadcast %3 : vector<1x4xf32> to vector<8x4xf32>
    %5 = arith.addf %2, %4 : vector<8x4xf32>
    %cst_5 = arith.constant 5.000000e-01 : f32
    %6 = vector.broadcast %cst_5 : f32 to vector<8x4xf32>
    %7 = arith.mulf %6, %5 : vector<8x4xf32>
    %8 = math.tanh %7 : vector<8x4xf32>
    %cst_6 = arith.constant 5.000000e-01 : f32
    %9 = vector.broadcast %cst_6 : f32 to vector<8x4xf32>
    %10 = arith.mulf %9, %8 : vector<8x4xf32>
    %cst_7 = arith.constant 5.000000e-01 : f32
    %11 = vector.broadcast %cst_7 : f32 to vector<8x4xf32>
    %12 = arith.addf %10, %11 : vector<8x4xf32>
    %c0_8 = arith.constant 0 : index
    %c0_9 = arith.constant 0 : index
    %13 = vector.load %arg4[%c0_8, %c0_9] : memref<8x4xf32, #tpu.memory_space<vmem>>, vector<8x4xf32>
    tpu.vector_store %arg4[%c0_8, %c0_9], %12 {strides = array<i32>} : memref<8x4xf32, #tpu.memory_space<vmem>>, vector<8x4xf32>,
    return
  }
  func.func @transform_0(%arg0: i32) -> (i32, i32) {
    %c0_i32 = arith.constant 0 : i32
    %c0_i32_0 = arith.constant 0 : i32
    return %arg0, %c0_i32 : i32, i32
  }
  func.func @transform_1(%arg0: i32) -> (i32, i32) {
    %c0_i32 = arith.constant 0 : i32
    %c0_i32_0 = arith.constant 0 : i32
    %c0_i32_1 = arith.constant 0 : i32
    return %c0_i32, %c0_i32_0 : i32, i32
  }
  func.func @transform_2(%arg0: i32) -> (i32, i32) {
    %c0_i32 = arith.constant 0 : i32
    %c0_i32_0 = arith.constant 0 : i32
    %c0_i32_1 = arith.constant 0 : i32
    return %c0_i32, %c0_i32_0 : i32, i32
  }
  func.func @transform_3(%arg0: i32) -> (i32, i32) {
    %c0_i32 = arith.constant 0 : i32
    %c0_i32_0 = arith.constant 0 : i32
    return %arg0, %c0_i32 : i32, i32
  }
}

</mosaic_0001>

<llo_original>
// kernel: logistic_regression_forward.1
$region0: #{logistic_regression_forward.1}
  #allocation0 [shape = 'u32[]', space=smem, size = 0x4, offset = 0x4, fixed_abs, tag = 'smem constant byte address 0x4 - core index']
  #allocation1 [shape = 'u32[144,128]{1,0:T(1,128)}', space=vmem, size = 0x12000, scoped, tag = 'internal scratch']
  %s0 = inlined_call_operand.vmem [shape: f32[8,32], index: 0, kind: input, shape index: {}]
  %s1 = inlined_call_operand.vmem [shape: f32[32,4], index: 1, kind: input, shape index: {}]
  %s2 = inlined_call_operand.vmem [shape: f32[1,4], index: 2, kind: input, shape index: {}]
  %s3 = inlined_call_operand.vmem [shape: f32[8,4], index: 3, kind: output, shape index: {}]
  %s4 = sld [smem:[#allocation0]]
  $region22: #{logistic_regression_forward.1} parent=0
    _
  %s6 = ssub.s32 1, %s4
  %s7 = scalar_select 0, %s6, %s4
  // Predicated region
  $region2: #{logistic_regression_forward.1} parent=0 // pred_check
    _
  $region3: #{logistic_regression_forward.1} parent=0 // pred_check_branch
    %9 = sbr.rel (0) target = $region5
  $region4: #{logistic_regression_forward.1} parent=0 // pred_region
    _
  $region5: #{logistic_regression_forward.1} parent=0 // pred_fallthru
    _
  // Predicated region
  $region6: #{logistic_regression_forward.1} parent=0 // pred_check
    _
  $region7: #{logistic_regression_forward.1} parent=0 // pred_check_branch
    %11 = sbr.rel (0) target = $region9
  $region8: #{logistic_regression_forward.1} parent=0 // pred_region
    _
  $region9: #{logistic_regression_forward.1} parent=0 // pred_fallthru
    _
  // Predicated region
  $region10: #{logistic_regression_forward.1} parent=0 // pred_check
    _
  $region11: #{logistic_regression_forward.1} parent=0 // pred_check_branch
    %13 = sbr.rel (0) target = $region13
  $region12: #{logistic_regression_forward.1} parent=0 // pred_region
    _
  $region13: #{logistic_regression_forward.1} parent=0 // pred_fallthru
    _
  %v14 = vld [vmem:[%s0] sm:$0xff]
  %v15 = vld [vmem:[%s1] sm:$0xff]
  %v16 = vld [vmem:[%s1 + $0x8] sm:$0xff]
  %v17 = vld [vmem:[%s1 + $0x10] sm:$0xff]
  %v18 = vld [vmem:[%s1 + $0x18] sm:$0xff]
  %v19 = vld [vmem:[%s2] sm:$0x1]
  %v21 = vlaneseq
  %v22 = vshrl.u32 %v21, 7
  %v23 = vsub.s32 0, %v22
  %v24 = vrot.slane %v19, %v23
  %vm26 = vcmask 261120
  %v28 = vsel %vm26, %v14, 0
  %30 = vmatprep.subr.mxu0 0.0
  %31 = vmatpush1.msra.mxu0 %v15
  %32 = vmatprep.subr.mxu0 0.0
  %33 = vmatpush1.msra.mxu0 %v16
  %34 = vmatprep.subr.mxu0 0.0
  %35 = vmatpush1.msra.mxu0 %v17
  %36 = vmatprep.subr.mxu0 0.0
  %37 = vmatpush1.msra.mxu0 %v18
  %38 = vmatprep.subr.mxu0 0.0
  %39 = vmatpush1.msra.mxu0 0.0
  %40 = vmatprep.subr.mxu0 0.0
  %41 = vmatpush1.msra.mxu0 0.0
  %42 = vmatprep.subr.mxu0 0.0
  %43 = vmatpush1.msra.mxu0 0.0
  %44 = vmatprep.subr.mxu0 0.0
  %45 = vmatpush1.msra.mxu0 0.0
  %46 = vmatprep.subr.mxu0 0.0
  %47 = vmatpush1.msra.mxu0 0.0
  %48 = vmatprep.subr.mxu0 0.0
  %49 = vmatpush1.msra.mxu0 0.0
  %50 = vmatprep.subr.mxu0 0.0
  %51 = vmatpush1.msra.mxu0 0.0
  %52 = vmatprep.subr.mxu0 0.0
  %53 = vmatpush1.msra.mxu0 0.0
  %54 = vmatprep.subr.mxu0 0.0
  %55 = vmatpush1.msra.mxu0 0.0
  %56 = vmatprep.subr.mxu0 0.0
  %57 = vmatpush1.msra.mxu0 0.0
  %58 = vmatprep.subr.mxu0 0.0
  %59 = vmatpush1.msra.mxu0 0.0
  %60 = vmatprep.subr.mxu0 0.0
  %61 = vmatpush1.msra.mxu0 0.0
  %62 = vmatprep.subr.mxu0 0.0
  %63 = vmatpush1.msra.mxu0 0.0
  %64 = vmatprep.subr.mxu0 0.0
  %65 = vmatpush1.msra.mxu0 0.0
  %66 = vmatprep.subr.mxu0 0.0
  %67 = vmatpush1.msra.mxu0 0.0
  %68 = vmatprep.subr.mxu0 0.0
  %69 = vmatpush1.msra.mxu0 0.0
  %70 = vmatprep.subr.mxu0 0.0
  %71 = vmatpush1.msra.mxu0 0.0
  %72 = vmatprep.subr.mxu0 0.0
  %73 = vmatpush1.msra.mxu0 0.0
  %74 = vmatprep.subr.mxu0 0.0
  %75 = vmatpush1.msra.mxu0 0.0
  %76 = vmatprep.subr.mxu0 0.0
  %77 = vmatpush1.msra.mxu0 0.0
  %78 = vmatprep.subr.mxu0 0.0
  %79 = vmatpush1.msra.mxu0 0.0
  %80 = vmatprep.subr.mxu0 0.0
  %81 = vmatpush1.msra.mxu0 0.0
  %82 = vmatprep.subr.mxu0 0.0
  %83 = vmatpush1.msra.mxu0 0.0
  %84 = vmatprep.subr.mxu0 0.0
  %85 = vmatpush1.msra.mxu0 0.0
  %86 = vmatprep.subr.mxu0 0.0
  %87 = vmatpush1.msra.mxu0 0.0
  %88 = vmatprep.subr.mxu0 0.0
  %89 = vmatpush1.msra.mxu0 0.0
  %90 = vmatprep.subr.mxu0 0.0
  %91 = vmatpush1.msra.mxu0 0.0
  %92 = vmatprep.subr.mxu0 0.0
  %93 = vmatpush1.msra.mxu0 0.0
  %94 = vmatprep.mubr.f32.mxu0 0.0
  %95 = vmatmul.mubr.f32.gmra.mrb[0].mxu0 %v28
  %v96 = vpop.f32.mrb[0].mxu0
  %v97 = vadd.f32 %v24, %v96
  %v98 = vpop.f32.mrb[0].mxu0
  %99 = vdwg.mxu0
  %v100 = vmul.f32 %v97, 0.5
  %v101 = vtanh.pop %v100
  %v102 = vmul.f32 %v101, 0.5
  %v103 = vadd.f32 %v102, 0.5
  %vm104 = vcmask 31744
  %105 = vst.msk [vmem:[%s3] sm:$0xff] %vm104, %v103
  // Predicated region
  $region14: #{logistic_regression_forward.1} parent=0 // pred_check
    _
  $region15: #{logistic_regression_forward.1} parent=0 // pred_check_branch
    %107 = sbr.rel (0) target = $region17
  $region16: #{logistic_regression_forward.1} parent=0 // pred_region
    _
  $region17: #{logistic_regression_forward.1} parent=0 // pred_fallthru
    _
  // Predicated region
  $region18: #{logistic_regression_forward.1} parent=0 // pred_check
    _
  $region19: #{logistic_regression_forward.1} parent=0 // pred_check_branch
    %109 = sbr.rel (0) target = $region21
  $region20: #{logistic_regression_forward.1} parent=0 // pred_region
    _
  $region21: #{logistic_regression_forward.1} parent=0 // pred_fallthru
    _

</llo_original>
